<compile_context>
chip_gen: v7x
topology: tpu7x:2x2x1
jax: 0.10.0
libtpu: 0.0.40
codegen_flags: <defaults>
</compile_context>

<pallas_src>
import functools

import jax
import jax.numpy as jnp
from jax.experimental import pallas as pl
from jax.experimental.pallas import tpu as pltpu

FUSION_TYPES = ('Mul_1x1', 'Mul_1x1_Single', 'Mul_HxW+1x1', 'Conv', 'Mul_HxW')

_VMEM_LIMIT = 32 * 1024 * 1024   # safe on v5e/v6e (128 MiB) and v7x (64 MiB)


# ---------------------------------------------------------------------------
# Elementwise kernels.  Blocks: x/y/out (rb, cb); per-row params (rb, 1)
# broadcast over lanes; per-pixel params (1, cb) broadcast over rows.
# ---------------------------------------------------------------------------

def _mul_1x1_kernel(x_ref, y_ref, wx_ref, bx_ref, wy_ref, by_ref, o_ref):
    o_ref[...] = (x_ref[...] * wx_ref[...] + bx_ref[...]
                  + y_ref[...] * wy_ref[...] + by_ref[...])


def _mul_1x1_single_kernel(x_ref, y_ref, wx_ref, bx_ref, o_ref):
    gate = jax.nn.sigmoid(wx_ref[...])                      # (rb, 1)
    o_ref[...] = x_ref[...] * gate + y_ref[...] * (1.0 - gate) + bx_ref[...]


def _mul_hxw_1x1_kernel(x_ref, y_ref,
                        wx1_ref, bx1_ref, wx2_ref, bx2_ref,
                        wy1_ref, by1_ref, wy2_ref, by2_ref, o_ref):
    # Do NOT pre-fold wx1*wx2 into a (C,HW) weight: these kernels are
    # HBM-bound and the extra VALU ops ride for free in slack VLIW slots.
    x1 = x_ref[...] * wx1_ref[...] + bx1_ref[...]
    x2 = x1 * wx2_ref[...] + bx2_ref[...]
    y1 = y_ref[...] * wy1_ref[...] + by1_ref[...]
    y2 = y1 * wy2_ref[...] + by2_ref[...]
    o_ref[...] = x2 + y2


def _mul_hxw_kernel(x_ref, y_ref, wx_ref, bx_ref, wy_ref, by_ref, o_ref):
    o_ref[...] = (x_ref[...] * wx_ref[...] + bx_ref[...]
                  + y_ref[...] * wy_ref[...] + by_ref[...])


# ---------------------------------------------------------------------------
# Tiling helpers (all sizes static, chosen at trace time).
# ---------------------------------------------------------------------------

def _largest_aligned_divisor(n, align, cap):
    """Largest d <= cap with d % align == 0 and n % d == 0 (or None)."""
    best = None
    d = align
    cap = min(cap, n)
    while d <= cap:
        if n % d == 0:
            best = d
        d += align
    return best


def _choose_tiles(R, L, itemsize, target_bytes=2 << 20):
    """Pick (rb, cb): lane dim multiple of 128 (or full), rows multiple of 8
    (or full), block ~target_bytes.  Always divides the array exactly."""
    target_elems = max(128, target_bytes // itemsize)
    if L % 128 != 0 or L <= target_elems:
        cb = L                                   # full dim (always legal)
    else:
        cb = _largest_aligned_divisor(L, 128, target_elems) or L
    row_budget = max(8, target_elems // max(cb, 1))
    if R % 8 != 0 or R <= row_budget:
        rb = R
    else:
        rb = _largest_aligned_divisor(R, 8, row_budget) or R
    # v7x has 2 TensorCores: if everything collapsed into one big block,
    # split the lane axis once so both cores get work (only when the block is
    # large enough that the extra grid-step overhead is negligible).
    if (rb == R and cb == L and rb * cb * itemsize >= (1 << 20)
            and cb % 256 == 0):
        cb //= 2
    return rb, cb


def _run_elementwise(kernel, x, y, params_2d):
    """x, y: (N, C, H, W); params_2d: list of (N*C, 1) or (1, H*W) arrays."""
    N, C, H, W = x.shape
    R, L = N * C, H * W
    xf = x.reshape(R, L)
    yf = y.reshape(R, L)
    rb, cb = _choose_tiles(R, L, x.dtype.itemsize)

    data_spec = pl.BlockSpec((rb, cb), lambda i, j: (i, j))

    def param_spec(p):
        if p.shape[0] == 1:                                  # (1, L) per-pixel
            return pl.BlockSpec((1, cb), lambda i, j: (0, j))
        return pl.BlockSpec((rb, 1), lambda i, j: (i, 0))    # (R, 1) per-row

    out = pl.pallas_call(
        kernel,
        out_shape=jax.ShapeDtypeStruct((R, L), x.dtype),
        grid=(R // rb, L // cb),
        in_specs=[data_spec, data_spec] + [param_spec(p) for p in params_2d],
        out_specs=data_spec,
        compiler_params=pltpu.CompilerParams(
            dimension_semantics=("parallel", "parallel"),
            vmem_limit_bytes=_VMEM_LIMIT),
    )(xf, yf, *params_2d)
    return out.reshape(N, C, H, W)


def _per_row(p, N, C):
    """(C,1,1) per-channel parameter -> (N*C, 1) per-row parameter."""
    return jnp.tile(p.reshape(1, C), (N, 1)).reshape(N * C, 1)


def _per_pixel(p, H, W):
    """(1,H,W) per-pixel parameter -> (1, H*W)."""
    return p.reshape(1, H * W)


# ---------------------------------------------------------------------------
# Conv: single fused MXU dot per batch element, tap extraction in-kernel.
# ---------------------------------------------------------------------------

def _conv_kernel(xf_ref, w_ref, b_ref, o_ref, taps_ref, *, K, Wp, C, L):
    # xf_ref  : (C, flat_len)  zero-padded image, spatial dims flattened
    # w_ref   : (O, K*K*C)     fused weights, column = (dy*K+dx)*C + c
    # b_ref   : (O, 1)
    # o_ref   : (O, L)         valid output at column i*Wp + j (j < Wo)
    # taps_ref: (K*K*C, L)     VMEM scratch tap matrix
    for dy in range(K):
        for dx in range(K):
            t = dy * K + dx
            s = dy * Wp + dx
            taps_ref[t * C:(t + 1) * C, :] = xf_ref[:, s:s + L]
    acc = jnp.dot(w_ref[...], taps_ref[...],
                  preferred_element_type=jnp.float32)
    o_ref[...] = (0.5 * (acc + b_ref[...])).astype(o_ref.dtype)


def _conv_forward(w, b, x, kernel_size):
    """0.5 * (Conv2d(x) + bias); stride 1, padding floor(K/2). w: (O,C,K,K)."""
    N, C, H, W = x.shape
    O = w.shape[0]
    K = kernel_size
    pad = K // 2
    Hp, Wp = H + 2 * pad, W + 2 * pad
    Ho, Wo = Hp - K + 1, Wp - K + 1

    # Per-tap flat-slice length, rounded up to a lane multiple (128) so the
    # output stores are lane-dense / unmasked.
    L = -(-(Ho * Wp) // 128) * 128
    max_start = (K - 1) * Wp + (K - 1)
    flat_len = max(Hp * Wp, max_start + L)

    # Host-side glue: ONE zero-pad + flatten of the input (~1x traffic).
    # No K^2-way im2col; tap extraction happens inside the kernel.
    xp = jnp.pad(x, ((0, 0), (0, 0), (pad, pad), (pad, pad)))
    xf = xp.reshape(N, C, Hp * Wp)
    if flat_len > Hp * Wp:
        xf = jnp.pad(xf, ((0, 0), (0, 0), (0, flat_len - Hp * Wp)))

    # Fused weights: column (dy*K + dx)*C + c  <->  w[o, c, dy, dx].
    w_fused = jnp.transpose(w, (0, 2, 3, 1)).reshape(O, K * K * C).astype(x.dtype)
    b2d = b.reshape(O, 1).astype(jnp.float32)

    kernel = functools.partial(_conv_kernel, K=K, Wp=Wp, C=C, L=L)
    out_flat = pl.pallas_call(
        kernel,
        out_shape=jax.ShapeDtypeStruct((N, O, L), x.dtype),
        grid=(N,),
        in_specs=[
            pl.BlockSpec((None, C, flat_len), lambda n: (n, 0, 0)),
            pl.BlockSpec((O, K * K * C), lambda n: (0, 0)),
            pl.BlockSpec((O, 1), lambda n: (0, 0)),
        ],
        out_specs=pl.BlockSpec((None, O, L), lambda n: (n, 0, 0)),
        scratch_shapes=[pltpu.VMEM((K * K * C, L), x.dtype)],
        compiler_params=pltpu.CompilerParams(
            dimension_semantics=("parallel",),
            vmem_limit_bytes=_VMEM_LIMIT),
    )(xf, w_fused, b2d)
    # TODO(synk): for very large images add an output-column (and O) tiling
    # grid axis so the (K*K*C, L) tap scratch stays within v7x's 64 MiB VMEM.

    # Valid outputs live at flat column i*Wp + j with j < Wo.
    return out_flat[:, :, :Ho * Wp].reshape(N, O, Ho, Wp)[:, :, :, :Wo]


# ---------------------------------------------------------------------------
# Forward dispatch
# ---------------------------------------------------------------------------

def static_fusion_forward(fusion_type, params, x, y, kernel_size=None):
    N, C, H, W = x.shape
    if fusion_type == 'Mul_1x1':
        p2d = [_per_row(params['wx'], N, C), _per_row(params['bx'], N, C),
               _per_row(params['wy'], N, C), _per_row(params['by'], N, C)]
        return _run_elementwise(_mul_1x1_kernel, x, y, p2d)
    if fusion_type == 'Mul_1x1_Single':
        p2d = [_per_row(params['wx'], N, C), _per_row(params['bx'], N, C)]
        return _run_elementwise(_mul_1x1_single_kernel, x, y, p2d)
    if fusion_type == 'Mul_HxW+1x1':
        p2d = [_per_pixel(params['wx1'], H, W), _per_pixel(params['bx1'], H, W),
               _per_row(params['wx2'], N, C), _per_row(params['bx2'], N, C),
               _per_pixel(params['wy1'], H, W), _per_pixel(params['by1'], H, W),
               _per_row(params['wy2'], N, C), _per_row(params['by2'], N, C)]
        return _run_elementwise(_mul_hxw_1x1_kernel, x, y, p2d)
    if fusion_type == 'Mul_HxW':
        p2d = [_per_pixel(params['wx'], H, W), _per_pixel(params['bx'], H, W),
               _per_pixel(params['wy'], H, W), _per_pixel(params['by'], H, W)]
        return _run_elementwise(_mul_hxw_kernel, x, y, p2d)
    if fusion_type == 'Conv':
        return _conv_forward(params['weight'], params['bias'], x, kernel_size)
    raise NotImplementedError(fusion_type)


# ---------------------------------------------------------------------------
# Deterministic parameter init (matches the torch module's reset_parameters)
# ---------------------------------------------------------------------------

def init_params(fusion_type, dims, out_plane, kernel_size, fusion_resolution, key):
    Hr, Wr = fusion_resolution if fusion_resolution is not None else (1, 1)

    def normal(k, shape):
        return 0.01 * jax.random.normal(k, shape, dtype=jnp.float32)

    if fusion_type == 'Mul_1x1':
        k1, k2 = jax.random.split(key)
        return {'wx': normal(k1, (dims, 1, 1)), 'wy': normal(k2, (dims, 1, 1)),
                'bx': jnp.zeros((dims, 1, 1), jnp.float32),
                'by': jnp.zeros((dims, 1, 1), jnp.float32)}
    elif fusion_type == 'Mul_1x1_Single':
        return {'wx': normal(key, (dims, 1, 1)),
                'bx': jnp.zeros((dims, 1, 1), jnp.float32)}
    elif fusion_type == 'Mul_HxW+1x1':
        k1, k2, k3, k4 = jax.random.split(key, 4)
        return {'wx1': normal(k1, (1, Hr, Wr)), 'wx2': normal(k2, (dims, 1, 1)),
                'wy1': normal(k3, (1, Hr, Wr)), 'wy2': normal(k4, (dims, 1, 1)),
                'bx1': jnp.zeros((1, Hr, Wr), jnp.float32),
                'bx2': jnp.zeros((dims, 1, 1), jnp.float32),
                'by1': jnp.zeros((1, Hr, Wr), jnp.float32),
                'by2': jnp.zeros((dims, 1, 1), jnp.float32)}
    elif fusion_type == 'Mul_HxW':
        k1, k2 = jax.random.split(key)
        return {'wx': normal(k1, (1, Hr, Wr)), 'wy': normal(k2, (1, Hr, Wr)),
                'bx': jnp.zeros((1, Hr, Wr), jnp.float32),
                'by': jnp.zeros((1, Hr, Wr), jnp.float32)}
    elif fusion_type == 'Conv':
        return {'weight': normal(key, (out_plane, dims, kernel_size, kernel_size)),
                'bias': jnp.zeros((out_plane,), jnp.float32)}
    else:
        raise NotImplementedError


# ---------------------------------------------------------------------------
# Pure-JAX references (semantics of the torch forward)
# ---------------------------------------------------------------------------

def reference_forward(fusion_type, params, x, y, kernel_size=None):
    if fusion_type == 'Mul_1x1':
        return x * params['wx'] + params['bx'] + y * params['wy'] + params['by']
    elif fusion_type == 'Mul_1x1_Single':
        gate = jax.nn.sigmoid(params['wx'])
        return x * gate + y * (1.0 - gate) + params['bx']
    elif fusion_type == 'Mul_HxW+1x1':
        x1 = x * params['wx1'] + params['bx1']
        x2 = x1 * params['wx2'] + params['bx2']
        y1 = y * params['wy1'] + params['by1']
        y2 = y1 * params['wy2'] + params['by2']
        return x2 + y2
    elif fusion_type == 'Mul_HxW':
        return (x * params['wx'] + params['bx']) + (y * params['wy'] + params['by'])
    elif fusion_type == 'Conv':
        pad = kernel_size // 2
        out = jax.lax.conv_general_dilated(
            x, params['weight'], window_strides=(1, 1),
            padding=[(pad, pad), (pad, pad)],
            dimension_numbers=('NCHW', 'OIHW', 'NCHW'))
        return 0.5 * (out + params['bias'].reshape(1, -1, 1, 1))
    else:
        raise NotImplementedError


# ---------------------------------------------------------------------------

if __name__ == "__main__":
    N, C, H, W = 2, 4, 16, 16
    out_plane = 8
    kernel_size = 3
    fusion_resolution = (H, W)

    key = jax.random.PRNGKey(0)
    kx, ky, kp = jax.random.split(key, 3)
    x = jax.random.normal(kx, (N, C, H, W), dtype=jnp.float32)
    y = jax.random.normal(ky, (N, C, H, W), dtype=jnp.float32)

    for i, ftype in enumerate(FUSION_TYPES):
        params = init_params(ftype, C, out_plane, kernel_size,
                             fusion_resolution, jax.random.fold_in(kp, i))
        out = static_fusion_forward(ftype, params, x, y, kernel_size=kernel_size)
        out = jax.block_until_ready(out)
        ref = reference_forward(ftype, params, x, y, kernel_size=kernel_size)
        assert out.shape == ref.shape, (ftype, out.shape, ref.shape)
        assert jnp.allclose(out, ref, rtol=1e-3, atol=1e-4), ftype

    print("KERNEL_OK")
</pallas_src>

<mosaic_0001>
module attributes {stable_mosaic.version = 11 : i64} {
  func.func @_mul_1x1_kernel(%arg0: i32, %arg1: i32, %arg2: memref<8x256xf32, #tpu.memory_space<vmem>>, %arg3: memref<8x256xf32, #tpu.memory_space<vmem>>, %arg4: memref<8x1xf32, #tpu.memory_space<vmem>>, %arg5: memref<8x1xf32, #tpu.memory_space<vmem>>, %arg6: memref<8x1xf32, #tpu.memory_space<vmem>>, %arg7: memref<8x1xf32, #tpu.memory_space<vmem>>, %arg8: memref<8x256xf32, #tpu.memory_space<vmem>>) attributes {dimension_semantics = [#tpu.dimension_semantics<parallel>, #tpu.dimension_semantics<parallel>], iteration_bounds = array<i64: 1, 1>, scalar_prefetch = 0 : i64, scratch_operands = 0 : i64, tpu.core_type = #tpu.core_type<tc>, window_params = [{transform_indices = @transform_0, window_bounds = array<i64: 8, 256>}, {transform_indices = @transform_1, window_bounds = array<i64: 8, 256>}, {transform_indices = @transform_2, window_bounds = array<i64: 8, 1>}, {transform_indices = @transform_3, window_bounds = array<i64: 8, 1>}, {transform_indices = @transform_4, window_bounds = array<i64: 8, 1>}, {transform_indices = @transform_5, window_bounds = array<i64: 8, 1>}, {transform_indices = @transform_6, window_bounds = array<i64: 8, 256>}]} {
    %c0 = arith.constant 0 : index
    %c0_0 = arith.constant 0 : index
    %0 = vector.load %arg2[%c0, %c0_0] : memref<8x256xf32, #tpu.memory_space<vmem>>, vector<8x256xf32>
    %c0_1 = arith.constant 0 : index
    %c0_2 = arith.constant 0 : index
    %1 = vector.load %arg4[%c0_1, %c0_2] : memref<8x1xf32, #tpu.memory_space<vmem>>, vector<8x1xf32>
    %2 = vector.broadcast %1 : vector<8x1xf32> to vector<8x256xf32>
    %3 = arith.mulf %0, %2 : vector<8x256xf32>
    %c0_3 = arith.constant 0 : index
    %c0_4 = arith.constant 0 : index
    %4 = vector.load %arg5[%c0_3, %c0_4] : memref<8x1xf32, #tpu.memory_space<vmem>>, vector<8x1xf32>
    %5 = vector.broadcast %4 : vector<8x1xf32> to vector<8x256xf32>
    %6 = arith.addf %3, %5 : vector<8x256xf32>
    %c0_5 = arith.constant 0 : index
    %c0_6 = arith.constant 0 : index
    %7 = vector.load %arg3[%c0_5, %c0_6] : memref<8x256xf32, #tpu.memory_space<vmem>>, vector<8x256xf32>
    %c0_7 = arith.constant 0 : index
    %c0_8 = arith.constant 0 : index
    %8 = vector.load %arg6[%c0_7, %c0_8] : memref<8x1xf32, #tpu.memory_space<vmem>>, vector<8x1xf32>
    %9 = vector.broadcast %8 : vector<8x1xf32> to vector<8x256xf32>
    %10 = arith.mulf %7, %9 : vector<8x256xf32>
    %11 = arith.addf %6, %10 : vector<8x256xf32>
    %c0_9 = arith.constant 0 : index
    %c0_10 = arith.constant 0 : index
    %12 = vector.load %arg7[%c0_9, %c0_10] : memref<8x1xf32, #tpu.memory_space<vmem>>, vector<8x1xf32>
    %13 = vector.broadcast %12 : vector<8x1xf32> to vector<8x256xf32>
    %14 = arith.addf %11, %13 : vector<8x256xf32>
    %c0_11 = arith.constant 0 : index
    %c0_12 = arith.constant 0 : index
    %15 = vector.load %arg8[%c0_11, %c0_12] : memref<8x256xf32, #tpu.memory_space<vmem>>, vector<8x256xf32>
    tpu.vector_store %arg8[%c0_11, %c0_12], %14 {strides = array<i32>} : memref<8x256xf32, #tpu.memory_space<vmem>>, vector<8x256xf32>,
    return
  }
  func.func @transform_0(%arg0: i32, %arg1: i32) -> (i32, i32) {
    %c0_i32 = arith.constant 0 : i32
    return %arg0, %arg1 : i32, i32
  }
  func.func @transform_1(%arg0: i32, %arg1: i32) -> (i32, i32) {
    %c0_i32 = arith.constant 0 : i32
    return %arg0, %arg1 : i32, i32
  }
  func.func @transform_2(%arg0: i32, %arg1: i32) -> (i32, i32) {
    %c0_i32 = arith.constant 0 : i32
    %c0_i32_0 = arith.constant 0 : i32
    return %arg0, %c0_i32 : i32, i32
  }
  func.func @transform_3(%arg0: i32, %arg1: i32) -> (i32, i32) {
    %c0_i32 = arith.constant 0 : i32
    %c0_i32_0 = arith.constant 0 : i32
    return %arg0, %c0_i32 : i32, i32
  }
  func.func @transform_4(%arg0: i32, %arg1: i32) -> (i32, i32) {
    %c0_i32 = arith.constant 0 : i32
    %c0_i32_0 = arith.constant 0 : i32
    return %arg0, %c0_i32 : i32, i32
  }
  func.func @transform_5(%arg0: i32, %arg1: i32) -> (i32, i32) {
    %c0_i32 = arith.constant 0 : i32
    %c0_i32_0 = arith.constant 0 : i32
    return %arg0, %c0_i32 : i32, i32
  }
  func.func @transform_6(%arg0: i32, %arg1: i32) -> (i32, i32) {
    %c0_i32 = arith.constant 0 : i32
    return %arg0, %arg1 : i32, i32
  }
}

</mosaic_0001>

<llo_original>
// kernel: tpu_custom_call.1
$region0: #{tpu_custom_call.1}
  #allocation0 [shape = 'u32[]', space=smem, size = 0x4, offset = 0x4, fixed_abs, tag = 'smem constant byte address 0x4 - core index']
  #allocation1 [shape = 'u32[144,128]{1,0:T(1,128)}', space=vmem, size = 0x12000, scoped, tag = 'internal scratch']
  %s0 = inlined_call_operand.vmem [shape: f32[8,256], index: 0, kind: input, shape index: {}]
  %s1 = inlined_call_operand.vmem [shape: f32[8,256], index: 1, kind: input, shape index: {}]
  %s2 = inlined_call_operand.vmem [shape: f32[8,1], index: 2, kind: input, shape index: {}]
  %s3 = inlined_call_operand.vmem [shape: f32[8,1], index: 3, kind: input, shape index: {}]
  %s4 = inlined_call_operand.vmem [shape: f32[8,1], index: 4, kind: input, shape index: {}]
  %s5 = inlined_call_operand.vmem [shape: f32[8,1], index: 5, kind: input, shape index: {}]
  %s6 = inlined_call_operand.hbm [shape: f32[8,256], index: 6, kind: output, shape index: {}]
  %s7 = sld [smem:[#allocation0]]
  $region34: #{tpu_custom_call.1} parent=0
    _
  %s9 = ssub.s32 1, %s7
  %s10 = scalar_select 0, %s9, %s7
  $region1: #{tpu_custom_call.1} parent=0
    #allocation2 [shape = 'u8[8192]{0}', space=vmem, size = 0x2000, scoped, tag = 'output window, operand 0, single buffered']
    #allocation3 [shape = 's32[1]{0}', space=sflag, size = 0x4, scoped, tag = 'scoped memory for tpu_custom_call.1']
    %11 = vsyncpa [#allocation3], 0
    // Predicated region
    $region2: #{tpu_custom_call.1} parent=1 // pred_check
      _
    $region3: #{tpu_custom_call.1} parent=1 // pred_check_branch
      %13 = sbr.rel (0) target = $region5
    $region4: #{tpu_custom_call.1} parent=1 // pred_region
      _
    $region5: #{tpu_custom_call.1} parent=1 // pred_fallthru
      _
    // Predicated region
    $region6: #{tpu_custom_call.1} parent=1 // pred_check
      _
    $region7: #{tpu_custom_call.1} parent=1 // pred_check_branch
      %15 = sbr.rel (0) target = $region9
    $region8: #{tpu_custom_call.1} parent=1 // pred_region
      _
    $region9: #{tpu_custom_call.1} parent=1 // pred_fallthru
      _
    // Predicated region
    $region10: #{tpu_custom_call.1} parent=1 // pred_check
      _
    $region11: #{tpu_custom_call.1} parent=1 // pred_check_branch
      %17 = sbr.rel (0) target = $region13
    $region12: #{tpu_custom_call.1} parent=1 // pred_region
      _
    $region13: #{tpu_custom_call.1} parent=1 // pred_fallthru
      _
    // Predicated region
    $region14: #{tpu_custom_call.1} parent=1 // pred_check
      _
    $region15: #{tpu_custom_call.1} parent=1 // pred_check_branch
      %19 = sbr.rel (0) target = $region17
    $region16: #{tpu_custom_call.1} parent=1 // pred_region
      _
    $region17: #{tpu_custom_call.1} parent=1 // pred_fallthru
      _
    // Predicated region
    $region18: #{tpu_custom_call.1} parent=1 // pred_check
      _
    $region19: #{tpu_custom_call.1} parent=1 // pred_check_branch
      %21 = sbr.rel (0) target = $region21
    $region20: #{tpu_custom_call.1} parent=1 // pred_region
      _
    $region21: #{tpu_custom_call.1} parent=1 // pred_fallthru
      _
    // Predicated region
    $region22: #{tpu_custom_call.1} parent=1 // pred_check
      _
    $region23: #{tpu_custom_call.1} parent=1 // pred_check_branch
      %23 = sbr.rel (0) target = $region25
    $region24: #{tpu_custom_call.1} parent=1 // pred_region
      _
    $region25: #{tpu_custom_call.1} parent=1 // pred_fallthru
      _
    %v24 = vld [vmem:[%s0] sm:$0xff]
    %v25 = vld [vmem:[%s0 + $0x8] sm:$0xff]
    %v26 = vld [vmem:[%s2] sm:$0xff]
    %28 = vset.pattern.permute.xlu0 0
    %29 = vperm.xlu0 %28, %v26
    %v30 = vpop.permute.xlu0 %29
    %v32 = vmul.f32 %v24, %v30
    %v33 = vmul.f32 %v25, %v30
    %v34 = vld [vmem:[%s3] sm:$0xff]
    %36 = vset.pattern.permute.xlu0 0
    %37 = vperm.xlu0 %36, %v34
    %v38 = vpop.permute.xlu0 %37
    %v40 = vadd.f32 %v32, %v38
    %v41 = vadd.f32 %v33, %v38
    %v42 = vld [vmem:[%s1] sm:$0xff]
    %v43 = vld [vmem:[%s1 + $0x8] sm:$0xff]
    %v44 = vld [vmem:[%s4] sm:$0xff]
    %46 = vset.pattern.permute.xlu0 0
    %47 = vperm.xlu0 %46, %v44
    %v48 = vpop.permute.xlu0 %47
    %v50 = vmul.f32 %v42, %v48
    %v51 = vmul.f32 %v43, %v48
    %v52 = vadd.f32 %v40, %v50
    %v53 = vadd.f32 %v41, %v51
    %v54 = vld [vmem:[%s5] sm:$0xff]
    %56 = vset.pattern.permute.xlu0 0
    %57 = vperm.xlu0 %56, %v54
    %v58 = vpop.permute.xlu0 %57
    %v60 = vadd.f32 %v52, %v58
    %v61 = vadd.f32 %v53, %v58
    %62 = vst [vmem:[#allocation2] sm:$0xff] %v60
    %63 = vst [vmem:[#allocation2 + $0x8] sm:$0xff] %v61
    // Predicated region
    $region26: #{tpu_custom_call.1} parent=1 // pred_check
      _
    $region27: #{tpu_custom_call.1} parent=1 // pred_check_branch
      %65 = sbr.rel (0) target = $region29
    $region28: #{tpu_custom_call.1} parent=1 // pred_region
      %s67 = ssub.s32 256, 256
      %68 = vsyncadd [#allocation3], %s67
      %s70 = sshll.u32 [#allocation2], 4
      %s71 = int_to_ptr.vmem [resolvable:$true] %s70
      %73 = dma.vmem_to_hbm [thread:$0]  %s71, 256, %s6, [#allocation3]
    $region29: #{tpu_custom_call.1} parent=1 // pred_fallthru
      _
    // Predicated region
    $region30: #{tpu_custom_call.1} parent=1 // pred_check
      _
    $region31: #{tpu_custom_call.1} parent=1 // pred_check_branch
      %75 = sbr.rel (0) target = $region33
    $region32: #{tpu_custom_call.1} parent=1 // pred_region
      %76 = dma.done [#allocation3], 256
    $region33: #{tpu_custom_call.1} parent=1 // pred_fallthru
      _
    %77 = vsyncpa [#allocation3], 1

</llo_original>
